<compile_context>
chip_gen: v6e
topology: v6e:2x2x1
jax: 0.10.0
libtpu: 0.0.40
codegen_flags: <defaults>
</compile_context>

<pallas_src>
import functools

import jax
import jax.numpy as jnp
from jax.experimental import pallas as pl
from jax.experimental.pallas import tpu as pltpu

_SUBLANES = 8
_LANES = 128


def _tpu_config():
    """Per-generation (num_splits, per-input block bytes, vmem_limit_bytes)."""
    vmem = None
    try:
        vmem = int(pltpu.get_tpu_info().vmem_capacity_bytes)
    except Exception:
        vmem = None
    kind = ""
    try:
        kind = jax.devices()[0].device_kind.lower()
    except Exception:
        pass
    # v7x: 64 MiB VMEM per TensorCore and 2 TensorCores per chip.
    is_v7x = (vmem is not None and vmem <= (64 << 20)) or ("7" in kind)
    if is_v7x:
        # 2-way megacore split, 2 MiB blocks (2 in x 2 buf = 8 MiB pipeline),
        # stay well under the 64 MiB physical VMEM.
        return 2, 2 << 20, 32 << 20
    # v5e / v6e: single TensorCore, 128 MiB VMEM -> no split, 4 MiB blocks.
    return 1, 4 << 20, 64 << 20


def _nce_loss_kernel(x_ref, t_ref, out_ref, acc_ref, *,
                     tile_rows, tiles_per_split, kp1, n_rows):
    c = pl.program_id(0)                      # split ("parallel") index
    i = pl.program_id(1)                      # row-tile ("arbitrary") index
    b = c * tiles_per_split + i               # global (un-clamped) row-tile index

    @pl.when(i == 0)
    def _init():
        acc_ref[...] = jnp.zeros_like(acc_ref)

    x = x_ref[...].astype(jnp.float32)
    t = t_ref[...].astype(jnp.float32)

    # Numerically stable BCE with logits (identical to the PyTorch max_val form):
    #   loss = max(x, 0) - x*t + log1p(exp(-|x|))
    loss = jnp.maximum(x, 0.0) - x * t + jnp.log1p(jnp.exp(-jnp.abs(x)))

    def _accumulate(vals):
        if tile_rows % _SUBLANES == 0:
            # vreg-shaped partial accumulation: pure VPU adds, no per-tile
            # cross-lane reduce.
            acc_ref[...] += vals.reshape(tile_rows // _SUBLANES, _SUBLANES, kp1).sum(axis=0)
        else:
            # Degenerate single-tile path (only taken when N < 8).
            acc_ref[0:1, :] += vals.sum(axis=0, keepdims=True)

    # Row masking is only needed for tiles whose row range extends past N:
    # the ragged last block and any clamped duplicate block from the split.
    needs_mask = (b + 1) * tile_rows > n_rows

    @pl.when(jnp.logical_not(needs_mask))
    def _fast():                              # hot path: no iota / compare / select
        _accumulate(loss)

    @pl.when(needs_mask)
    def _tail():
        row = jax.lax.broadcasted_iota(jnp.int32, (tile_rows, kp1), 0) + b * tile_rows
        _accumulate(jnp.where(row < n_rows, loss, 0.0))

    @pl.when(i == tiles_per_split - 1)
    def _finalize():
        total = jnp.sum(acc_ref[...])          # single cross-lane reduce per split
        out_ref[...] = jnp.full((1, _SUBLANES, _LANES), total, dtype=out_ref.dtype)


def nce_loss_pallas(logits, nce_target, size_average=True, *,
                    block_bytes=None, num_splits=None):
    """Pallas TPU implementation of nce_loss.forward((logits, nce_target))."""
    assert logits.shape == nce_target.shape, "Target size must equal input size"
    assert logits.ndim == 2, "nce_loss expects (N, K+1) inputs"
    n, kp1 = logits.shape

    cfg_splits, cfg_block_bytes, vmem_limit = _tpu_config()
    if block_bytes is None:
        block_bytes = cfg_block_bytes
    if num_splits is None:
        num_splits = cfg_splits

    # Rows per tile: a multiple of 8 (sublane), never larger than N, and sized so
    # one f32 input block is ~block_bytes (amortizes per-grid-step overhead).
    bytes_per_row = kp1 * 4
    cap_rows = max(_SUBLANES, (block_bytes // bytes_per_row) // _SUBLANES * _SUBLANES)
    if n >= _SUBLANES:
        tile_rows = min(cap_rows, (n // _SUBLANES) * _SUBLANES)
    else:
        tile_rows = n   # tiny batch: one block whose row dim equals the full dim

    num_row_tiles = pl.cdiv(n, tile_rows)
    num_splits = max(1, min(num_splits, num_row_tiles))
    tiles_per_split = pl.cdiv(num_row_tiles, num_splits)
    last_tile = num_row_tiles - 1

    # Clamp so a split overshoot never generates an out-of-range DMA; the kernel's
    # row mask (keyed on the *un-clamped* tile index) zeroes duplicate blocks.
    in_map = lambda c, i: (jnp.minimum(c * tiles_per_split + i, last_tile), 0)

    kernel = functools.partial(
        _nce_loss_kernel,
        tile_rows=tile_rows,
        tiles_per_split=tiles_per_split,
        kp1=kp1,
        n_rows=n,
    )

    partials = pl.pallas_call(
        kernel,
        out_shape=jax.ShapeDtypeStruct((num_splits, _SUBLANES, _LANES), jnp.float32),
        grid_spec=pltpu.PrefetchScalarGridSpec(
            num_scalar_prefetch=0,
            grid=(num_splits, tiles_per_split),
            in_specs=[
                pl.BlockSpec((tile_rows, kp1), in_map),
                pl.BlockSpec((tile_rows, kp1), in_map),
            ],
            out_specs=pl.BlockSpec((1, _SUBLANES, _LANES), lambda c, i: (c, 0, 0)),
            scratch_shapes=[pltpu.VMEM((_SUBLANES, kp1), jnp.float32)],
        ),
        compiler_params=pltpu.CompilerParams(
            dimension_semantics=("parallel", "arbitrary"),
            vmem_limit_bytes=vmem_limit,
        ),
    )(logits, nce_target)

    total = jnp.sum(partials[:, 0, 0])        # one scalar per split (per core on v7x)
    if size_average:
        total = total / jnp.float32(n)        # PyTorch ref divides by N (dim 0)
    return total


def _reference(logits, target, size_average=True):
    # Exact PyTorch formula from the spec (reduce=False, then sum, then /N).
    x = logits.astype(jnp.float32)
    t = target.astype(jnp.float32)
    max_val = jnp.maximum(-x, 0.0)
    loss = x - x * t + max_val + jnp.log(jnp.exp(-max_val) + jnp.exp(-x - max_val))
    total = jnp.sum(loss)
    if size_average:
        total = total / x.shape[0]
    return total


if __name__ == "__main__":
    key = jax.random.PRNGKey(0)
    ok = True

    # (N, K+1) cases: aligned; ragged rows (N % 8 != 0); and a forced multi-tile,
    # 2-way-split case (tiny block_bytes) exercising the tail mask + clamped
    # duplicate block path.
    cases = [
        ((8, 32), {}),
        ((22, 17), {}),
        ((64, 33), dict(block_bytes=4096, num_splits=2)),
    ]
    for (N, Kp1), kwargs in cases:
        k1, k2, key = jax.random.split(key, 3)
        logits = jax.random.normal(k1, (N, Kp1), dtype=jnp.float32)
        nce_target = jax.random.bernoulli(k2, p=0.5, shape=(N, Kp1)).astype(jnp.float32)
        for size_average in (True, False):
            out = jax.block_until_ready(
                nce_loss_pallas(logits, nce_target, size_average=size_average, **kwargs))
            ref = _reference(logits, nce_target, size_average=size_average)
            if not jnp.allclose(out, ref, rtol=1e-5, atol=1e-5):
                ok = False
                print("MISMATCH", (N, Kp1, size_average, kwargs), float(out), float(ref))

    # bf16 target at the HBM boundary (0/1 is exact in bf16): halves target bytes.
    k1, k2, key = jax.random.split(key, 3)
    logits = jax.random.normal(k1, (16, 32), dtype=jnp.float32)
    tgt = jax.random.bernoulli(k2, p=0.5, shape=(16, 32))
    out = jax.block_until_ready(nce_loss_pallas(logits, tgt.astype(jnp.bfloat16)))
    ref = _reference(logits, tgt.astype(jnp.float32))
    if not jnp.allclose(out, ref, rtol=1e-5, atol=1e-5):
        ok = False
        print("MISMATCH bf16-target", float(out), float(ref))

    if ok:
        print("KERNEL_OK")
</pallas_src>

<mosaic_0001>
module attributes {stable_mosaic.version = 11 : i64} {
  func.func @_nce_loss_kernel(%arg0: i32, %arg1: i32, %arg2: memref<8x32xf32, #tpu.memory_space<vmem>>, %arg3: memref<8x32xf32, #tpu.memory_space<vmem>>, %arg4: memref<1x8x128xf32, #tpu.memory_space<vmem>>, %arg5: memref<8x32xf32, #tpu.memory_space<vmem>>) attributes {dimension_semantics = [#tpu.dimension_semantics<parallel>, #tpu.dimension_semantics<arbitrary>], iteration_bounds = array<i64: 1, 1>, scalar_prefetch = 0 : i64, scratch_operands = 1 : i64, tpu.core_type = #tpu.core_type<tc>, window_params = [{transform_indices = @transform_0, window_bounds = array<i64: 8, 32>}, {transform_indices = @transform_1, window_bounds = array<i64: 8, 32>}, {transform_indices = @transform_2, window_bounds = array<i64: 1, 8, 128>}]} {
    %c1_i32 = arith.constant 1 : i32
    %0 = arith.muli %arg0, %c1_i32 : i32
    %1 = arith.addi %0, %arg1 : i32
    %c0_i32 = arith.constant 0 : i32
    %2 = arith.cmpi eq, %arg1, %c0_i32 : i32
    %3 = arith.extui %2 : i1 to i32
    %c0_i32_0 = arith.constant 0 : i32
    %4 = arith.cmpi ne, %3, %c0_i32_0 : i32
    scf.if %4 {
      %cst_11 = arith.constant 0.000000e+00 : f32
      %28 = vector.broadcast %cst_11 : f32 to vector<8x32xf32>
      %c0_12 = arith.constant 0 : index
      %c0_13 = arith.constant 0 : index
      %29 = vector.load %arg5[%c0_12, %c0_13] : memref<8x32xf32, #tpu.memory_space<vmem>>, vector<8x32xf32>
      tpu.vector_store %arg5[%c0_12, %c0_13], %28 {strides = array<i32>} : memref<8x32xf32, #tpu.memory_space<vmem>>, vector<8x32xf32>,
    } else {
    }
    %c0 = arith.constant 0 : index
    %c0_1 = arith.constant 0 : index
    %5 = vector.load %arg2[%c0, %c0_1] : memref<8x32xf32, #tpu.memory_space<vmem>>, vector<8x32xf32>
    %c0_2 = arith.constant 0 : index
    %c0_3 = arith.constant 0 : index
    %6 = vector.load %arg3[%c0_2, %c0_3] : memref<8x32xf32, #tpu.memory_space<vmem>>, vector<8x32xf32>
    %cst = arith.constant 0.000000e+00 : f32
    %7 = vector.broadcast %cst : f32 to vector<8x32xf32>
    %8 = arith.maximumf %5, %7 : vector<8x32xf32>
    %9 = arith.mulf %5, %6 : vector<8x32xf32>
    %10 = arith.subf %8, %9 : vector<8x32xf32>
    %11 = math.absf %5 : vector<8x32xf32>
    %cst_4 = arith.constant 0.000000e+00 : f32
    %12 = vector.broadcast %cst_4 : f32 to vector<8x32xf32>
    %13 = arith.subf %12, %11 : vector<8x32xf32>
    %14 = math.exp %13 : vector<8x32xf32>
    %15 = math.log1p %14 : vector<8x32xf32>
    %16 = arith.addf %10, %15 : vector<8x32xf32>
    %c1_i32_5 = arith.constant 1 : i32
    %17 = arith.addi %1, %c1_i32_5 : i32
    %c8_i32 = arith.constant 8 : i32
    %18 = arith.muli %17, %c8_i32 : i32
    %c8_i32_6 = arith.constant 8 : i32
    %19 = arith.cmpi sgt, %18, %c8_i32_6 : i32
    %true = arith.constant true
    %20 = arith.xori %19, %true : i1
    %21 = arith.extui %20 : i1 to i32
    %c0_i32_7 = arith.constant 0 : i32
    %22 = arith.cmpi ne, %21, %c0_i32_7 : i32
    scf.if %22 {
      %c0_11 = arith.constant 0 : index
      %c0_12 = arith.constant 0 : index
      %28 = vector.load %arg5[%c0_11, %c0_12] : memref<8x32xf32, #tpu.memory_space<vmem>>, vector<8x32xf32>
      %29 = vector.shape_cast %16 : vector<8x32xf32> to vector<1x8x32xf32>
      %cst_13 = arith.constant dense<0.000000e+00> : vector<8x32xf32>
      %30 = vector.multi_reduction <add>, %29, %cst_13 [0] : vector<1x8x32xf32> to vector<8x32xf32>
      %31 = arith.addf %28, %30 : vector<8x32xf32>
      %c0_14 = arith.constant 0 : index
      %c0_15 = arith.constant 0 : index
      %32 = vector.load %arg5[%c0_14, %c0_15] : memref<8x32xf32, #tpu.memory_space<vmem>>, vector<8x32xf32>
      tpu.vector_store %arg5[%c0_14, %c0_15], %31 {strides = array<i32>} : memref<8x32xf32, #tpu.memory_space<vmem>>, vector<8x32xf32>,
    } else {
    }
    %23 = arith.extui %19 : i1 to i32
    %c0_i32_8 = arith.constant 0 : i32
    %24 = arith.cmpi ne, %23, %c0_i32_8 : i32
    scf.if %24 {
      %28 = tpu.iota {dimensions = array<i32: 0>} : vector<8x32xi32>
      %c8_i32_11 = arith.constant 8 : i32
      %29 = arith.muli %1, %c8_i32_11 : i32
      %30 = vector.broadcast %29 : i32 to vector<8x32xi32>
      %31 = arith.addi %28, %30 : vector<8x32xi32>
      %c8_i32_12 = arith.constant 8 : i32
      %32 = vector.broadcast %c8_i32_12 : i32 to vector<8x32xi32>
      %33 = arith.cmpi slt, %31, %32 : vector<8x32xi32>
      %cst_13 = arith.constant 0.000000e+00 : f32
      %34 = vector.broadcast %cst_13 : f32 to vector<8x32xf32>
      %35 = arith.select %33, %16, %34 : vector<8x32xi1>, vector<8x32xf32>
      %c0_14 = arith.constant 0 : index
      %c0_15 = arith.constant 0 : index
      %36 = vector.load %arg5[%c0_14, %c0_15] : memref<8x32xf32, #tpu.memory_space<vmem>>, vector<8x32xf32>
      %37 = vector.shape_cast %35 : vector<8x32xf32> to vector<1x8x32xf32>
      %cst_16 = arith.constant dense<0.000000e+00> : vector<8x32xf32>
      %38 = vector.multi_reduction <add>, %37, %cst_16 [0] : vector<1x8x32xf32> to vector<8x32xf32>
      %39 = arith.addf %36, %38 : vector<8x32xf32>
      %c0_17 = arith.constant 0 : index
      %c0_18 = arith.constant 0 : index
      %40 = vector.load %arg5[%c0_17, %c0_18] : memref<8x32xf32, #tpu.memory_space<vmem>>, vector<8x32xf32>
      tpu.vector_store %arg5[%c0_17, %c0_18], %39 {strides = array<i32>} : memref<8x32xf32, #tpu.memory_space<vmem>>, vector<8x32xf32>,
    } else {
    }
    %c0_i32_9 = arith.constant 0 : i32
    %25 = arith.cmpi eq, %arg1, %c0_i32_9 : i32
    %26 = arith.extui %25 : i1 to i32
    %c0_i32_10 = arith.constant 0 : i32
    %27 = arith.cmpi ne, %26, %c0_i32_10 : i32
    scf.if %27 {
      %c0_11 = arith.constant 0 : index
      %c0_12 = arith.constant 0 : index
      %28 = vector.load %arg5[%c0_11, %c0_12] : memref<8x32xf32, #tpu.memory_space<vmem>>, vector<8x32xf32>
      %29 = vector.shape_cast %28 : vector<8x32xf32> to vector<1x8x32xf32>
      %cst_13 = arith.constant dense<0.000000e+00> : vector<1xf32>
      %30 = vector.multi_reduction <add>, %29, %cst_13 [1, 2] : vector<1x8x32xf32> to vector<1xf32>
      %31 = vector.shape_cast %30 : vector<1xf32> to vector<1x1x1xf32>
      %32 = vector.extract %31[0, 0, 0] : f32 from vector<1x1x1xf32>
      %33 = vector.broadcast %32 : f32 to vector<1x8x128xf32>
      %c0_14 = arith.constant 0 : index
      %c0_15 = arith.constant 0 : index
      %c0_16 = arith.constant 0 : index
      %34 = vector.load %arg4[%c0_14, %c0_15, %c0_16] : memref<1x8x128xf32, #tpu.memory_space<vmem>>, vector<1x8x128xf32>
      tpu.vector_store %arg4[%c0_14, %c0_15, %c0_16], %33 {strides = array<i32>} : memref<1x8x128xf32, #tpu.memory_space<vmem>>, vector<1x8x128xf32>,
    } else {
    }
    return
  }
  func.func @transform_0(%arg0: i32, %arg1: i32) -> (i32, i32) {
    %c1_i32 = arith.constant 1 : i32
    %0 = arith.muli %arg0, %c1_i32 : i32
    %1 = arith.addi %0, %arg1 : i32
    %c0_i32 = arith.constant 0 : i32
    %2 = arith.minsi %1, %c0_i32 : i32
    %c0_i32_0 = arith.constant 0 : i32
    %c0_i32_1 = arith.constant 0 : i32
    return %2, %c0_i32_0 : i32, i32
  }
  func.func @transform_1(%arg0: i32, %arg1: i32) -> (i32, i32) {
    %c1_i32 = arith.constant 1 : i32
    %0 = arith.muli %arg0, %c1_i32 : i32
    %1 = arith.addi %0, %arg1 : i32
    %c0_i32 = arith.constant 0 : i32
    %2 = arith.minsi %1, %c0_i32 : i32
    %c0_i32_0 = arith.constant 0 : i32
    %c0_i32_1 = arith.constant 0 : i32
    return %2, %c0_i32_0 : i32, i32
  }
  func.func @transform_2(%arg0: i32, %arg1: i32) -> (i32, i32, i32) {
    %c0_i32 = arith.constant 0 : i32
    %c0_i32_0 = arith.constant 0 : i32
    %c0_i32_1 = arith.constant 0 : i32
    return %arg0, %c0_i32, %c0_i32_0 : i32, i32, i32
  }
}

</mosaic_0001>

<llo_original>
// kernel: tpu_custom_call.1
$region0: #{tpu_custom_call.1}
  #allocation0 [shape = 'u32[]', space=smem, size = 0x4, offset = 0x4, fixed_abs, tag = 'smem constant byte address 0x4 - core index']
  #allocation1 [shape = 'u32[144,128]{1,0:T(1,128)}', space=vmem, size = 0x12000, scoped, tag = 'internal scratch']
  #allocation2 [shape = 'f32[8,32]{1,0:T(8,128)}', space=vmem, size = 0x1000, scoped, tag = 'scratch operand']
  %s0 = inlined_call_operand.hbm [shape: f32[8,32], index: 0, kind: input, shape index: {}]
  %s1 = inlined_call_operand.hbm [shape: f32[8,32], index: 1, kind: input, shape index: {}]
  %s2 = inlined_call_operand.hbm [shape: f32[1,8,128], index: 2, kind: output, shape index: {}]
  %s3 = sld [smem:[#allocation0]]
  $region42: #{tpu_custom_call.1} parent=0
    _
  %s5 = ssub.s32 1, %s3
  %s6 = scalar_select 0, %s5, %s3
  $region1: #{tpu_custom_call.1} parent=0
    #allocation3 [shape = 'u8[4096]{0}', space=vmem, size = 0x1000, scoped, tag = 'input window, operand 0, single buffered']
    #allocation4 [shape = 's32[1]{0}', space=sflag, size = 0x4, scoped, tag = 'scoped memory for tpu_custom_call.1']
    #allocation5 [shape = 's32[1]{0}', space=sflag, size = 0x4, scoped, tag = 'scoped memory for tpu_custom_call.1']
    #allocation6 [shape = 'u8[4096]{0}', space=vmem, size = 0x1000, scoped, tag = 'input window, operand 1, single buffered']
    #allocation7 [shape = 's32[1]{0}', space=sflag, size = 0x4, scoped, tag = 'scoped memory for tpu_custom_call.1']
    #allocation8 [shape = 'u8[4096]{0}', space=vmem, size = 0x1000, scoped, tag = 'output window, operand 0, single buffered']
    %7 = vsyncpa [#allocation4], 0
    %8 = vsyncpa [#allocation7], 0
    %9 = vsyncpa [#allocation5], 0
    // Predicated region
    $region2: #{tpu_custom_call.1} parent=1 // pred_check
      _
    $region3: #{tpu_custom_call.1} parent=1 // pred_check_branch
      %11 = sbr.rel (0) target = $region5
    $region4: #{tpu_custom_call.1} parent=1 // pred_region
      %s12 = sadd.s32 0, 0
      %p13 = scmp.lt.s32.totalorder %s12, 0
      %s14 = scalar_select %p13, %s12, 0
      %s16 = ssub.s32 128, 128
      %17 = vsyncadd [#allocation4], %s16
      %s18 = smul.addr %s14, 128
      %s19 = scalar_lea.hbm %s0, %s18
      %s21 = sshll.u32 [#allocation3], 4
      %s22 = int_to_ptr.vmem [resolvable:$true] %s21
      %24 = dma.hbm_to_vmem [thread:$0]  %s19, 128, %s22, [#allocation4]
    $region5: #{tpu_custom_call.1} parent=1 // pred_fallthru
      _
    // Predicated region
    $region6: #{tpu_custom_call.1} parent=1 // pred_check
      _
    $region7: #{tpu_custom_call.1} parent=1 // pred_check_branch
      %26 = sbr.rel (0) target = $region9
    $region8: #{tpu_custom_call.1} parent=1 // pred_region
      %s27 = sadd.s32 0, 0
      %p28 = scmp.lt.s32.totalorder %s27, 0
      %s29 = scalar_select %p28, %s27, 0
      %s31 = ssub.s32 128, 128
      %32 = vsyncadd [#allocation7], %s31
      %s33 = smul.addr %s29, 128
      %s34 = scalar_lea.hbm %s1, %s33
      %s36 = sshll.u32 [#allocation6], 4
      %s37 = int_to_ptr.vmem [resolvable:$true] %s36
      %39 = dma.hbm_to_vmem [thread:$0]  %s34, 128, %s37, [#allocation7]
    $region9: #{tpu_custom_call.1} parent=1 // pred_fallthru
      _
    // Predicated region
    $region10: #{tpu_custom_call.1} parent=1 // pred_check
      _
    $region11: #{tpu_custom_call.1} parent=1 // pred_check_branch
      %41 = sbr.rel (0) target = $region13
    $region12: #{tpu_custom_call.1} parent=1 // pred_region
      %42 = dma.done [#allocation4], 128
    $region13: #{tpu_custom_call.1} parent=1 // pred_fallthru
      _
    // Predicated region
    $region14: #{tpu_custom_call.1} parent=1 // pred_check
      _
    $region15: #{tpu_custom_call.1} parent=1 // pred_check_branch
      %44 = sbr.rel (0) target = $region17
    $region16: #{tpu_custom_call.1} parent=1 // pred_region
      %45 = dma.done [#allocation7], 128
    $region17: #{tpu_custom_call.1} parent=1 // pred_fallthru
      _
    %s46 = sadd.s32 0, 0
    %p47 = scmp.lt.s32.totalorder %s46, 0
    %s48 = scalar_select %p47, %s46, 0
    %s49 = sadd.s32 0, 0
    %p50 = scmp.lt.s32.totalorder %s49, 0
    %s51 = scalar_select %p50, %s49, 0
    %s52 = sadd.s32 0, 0
    %p53 = scmp.eq.s32.totalorder 0, 0
    // Predicated region
    $region18: #{tpu_custom_call.1} parent=1 // pred_check
      %p54 = pneg %p53
    $region19: #{tpu_custom_call.1} parent=1 // pred_check_branch
      %56 = sbr.rel (%p54) target = $region21
    $region20: #{tpu_custom_call.1} parent=1 // pred_region
      %vm57 = vcmask 261120
      %58 = vst.msk [vmem:[#allocation2] sm:$0xff] %vm57, 0.0
    $region21: #{tpu_custom_call.1} parent=1 // pred_fallthru
      _
    %v59 = vld [vmem:[#allocation3] sm:$0xff]
    %v60 = vld [vmem:[#allocation6] sm:$0xff]
    %v61 = vmax.f32 %v59, 0.0
    %v62 = vmul.f32 %v59, %v60
    %v63 = vsub.f32 %v61, %v62
    %v64 = vand.u32 2147483647, %v59
    %v65 = vsub.f32 0.0, %v64
    %v66 = vmul.f32 %v65, 1.442695
    %v67 = vpow.pop %v66
    %v68 = vadd.f32 %v67, 1.0
    %v69 = vlog2.pop %v68
    %v70 = vmul.f32 %v69, 0.6931472
    %v71 = vmul.f32 -0.5, %v67
    %v72 = vadd.f32 %v71, 1.0
    %v73 = vmul.f32 %v72, %v67
    %v74 = vand.u32 2147483647, %v67
    %vm75 = vcmp.lt.f32.partialorder %v74, 0.0004427343
    %v76 = vsel %vm75, %v73, %v70
    %v77 = vadd.f32 %v63, %v76
    %s78 = sadd.s32 %s52, 1
    %s79 = smul.u32 %s78, 8
    %p80 = scmp.gt.s32.totalorder %s79, 8
    %p81 = scmp.le.s32.totalorder %s79, 8
    // Predicated region
    $region22: #{tpu_custom_call.1} parent=1 // pred_check
      %p82 = pneg %p81
    $region23: #{tpu_custom_call.1} parent=1 // pred_check_branch
      %84 = sbr.rel (%p82) target = $region25
    $region24: #{tpu_custom_call.1} parent=1 // pred_region
      %v85 = vld [vmem:[#allocation2] sm:$0xff]
      %v86 = vadd.f32 %v77, 0.0
      %v87 = vadd.f32 %v85, %v86
      %vm88 = vcmask 261120
      %89 = vst.msk [vmem:[#allocation2] sm:$0xff] %vm88, %v87
    $region25: #{tpu_custom_call.1} parent=1 // pred_fallthru
      _
    // Predicated region
    $region26: #{tpu_custom_call.1} parent=1 // pred_check
      %p90 = pneg %p80
    $region27: #{tpu_custom_call.1} parent=1 // pred_check_branch
      %92 = sbr.rel (%p90) target = $region29
    $region28: #{tpu_custom_call.1} parent=1 // pred_region
      %v93 = vlaneseq
      %v94 = vshrl.u32 %v93, 7
      %s95 = smul.u32 %s52, 8
      %v96 = vstv %s95
      %v97 = vadd.s32 %v94, %v96
      %vm98 = vcmp.lt.s32.totalorder %v97, 8
      %v99 = vsel %vm98, %v77, 0.0
      %v100 = vld [vmem:[#allocation2] sm:$0xff]
      %v101 = vadd.f32 %v99, 0.0
      %v102 = vadd.f32 %v100, %v101
      %vm103 = vcmask 261120
      %104 = vst.msk [vmem:[#allocation2] sm:$0xff] %vm103, %v102
    $region29: #{tpu_custom_call.1} parent=1 // pred_fallthru
      _
    // Predicated region
    $region30: #{tpu_custom_call.1} parent=1 // pred_check
      %p105 = pneg %p53
    $region31: #{tpu_custom_call.1} parent=1 // pred_check_branch
      %107 = sbr.rel (%p105) target = $region33
    $region32: #{tpu_custom_call.1} parent=1 // pred_region
      %v108 = vld [vmem:[#allocation2] sm:$0xff]
      %vm109 = vcmask 261120
      %v110 = vsel %vm109, %v108, 0.0
      %111 = vadd.xlane.f32.xlu0 %v110
      %v112 = vpop.xlane.xlu0 %111
      %v113 = vrot.slane %v112, 4
      %v114 = vadd.f32 %v112, %v113
      %v115 = vrot.slane %v114, 2
      %v116 = vadd.f32 %v114, %v115
      %v117 = vrot.slane %v116, 1
      %v118 = vadd.f32 %v116, %v117
      %s119 = vtos %v118
      %v120 = vstv %s119
      %121 = vst [vmem:[#allocation8] sm:$0xff] %v120
    $region33: #{tpu_custom_call.1} parent=1 // pred_fallthru
      _
    // Predicated region
    $region34: #{tpu_custom_call.1} parent=1 // pred_check
      _
    $region35: #{tpu_custom_call.1} parent=1 // pred_check_branch
      %123 = sbr.rel (0) target = $region37
    $region36: #{tpu_custom_call.1} parent=1 // pred_region
      %s125 = ssub.s32 128, 128
      %126 = vsyncadd [#allocation5], %s125
      %s128 = sshll.u32 [#allocation8], 4
      %s129 = int_to_ptr.vmem [resolvable:$true] %s128
      %131 = dma.vmem_to_hbm [thread:$0]  %s129, 128, %s2, [#allocation5]
    $region37: #{tpu_custom_call.1} parent=1 // pred_fallthru
      _
    // Predicated region
    $region38: #{tpu_custom_call.1} parent=1 // pred_check
      _
    $region39: #{tpu_custom_call.1} parent=1 // pred_check_branch
      %133 = sbr.rel (0) target = $region41
    $region40: #{tpu_custom_call.1} parent=1 // pred_region
      %134 = dma.done [#allocation5], 128
    $region41: #{tpu_custom_call.1} parent=1 // pred_fallthru
      _
    %135 = vsyncpa [#allocation4], 1
    %136 = vsyncpa [#allocation7], 1
    %137 = vsyncpa [#allocation5], 1

</llo_original>
